<compile_context>
chip_gen: v5e
topology: v5e:2x2
jax: 0.10.0
libtpu: 0.0.40
codegen_flags: <defaults>
</compile_context>

<pallas_src>
import functools

import jax
import jax.numpy as jnp
import numpy as np
from jax.experimental import pallas as pl
from jax.experimental.pallas import tpu as pltpu


def _round_up(n, m):
    return (n + m - 1) // m * m


def _final_layer_kernel(x_ref, mod_ref, wc_ref, bc_ref, o_ref, *, inv_c, eps):
    # x_ref:   (1, TN, Cp) token tile
    # mod_ref: (1, 2, Cp)  per-batch [shift ; 1+scale], f32
    # wc_ref:  (Cp, Cop)   conv weight (input-channel major)
    # bc_ref:  (1, Cop)    conv bias, f32
    x = x_ref[0].astype(jnp.float32)                       # (TN, Cp)
    shift = mod_ref[0, 0:1, :]                             # (1, Cp)
    s1p = mod_ref[0, 1:2, :]                               # (1, Cp)

    # LayerNorm over the channel dim (elementwise_affine=False).  Padded channel
    # lanes of x are zero, so the sums are exact; divide by the *real* channel
    # count via inv_c.  Single pass: E[x], E[x^2].
    mu = jnp.sum(x, axis=-1, keepdims=True) * inv_c
    var = jnp.sum(x * x, axis=-1, keepdims=True) * inv_c - mu * mu
    xn = (x - mu) * jax.lax.rsqrt(jnp.maximum(var, 0.0) + eps)

    # modulate(x, shift, scale) = x * (1 + scale) + shift.  Padded lanes of
    # (1+scale) and shift are zero, so padded channels of xm are exactly 0 and
    # contribute nothing to the matmul (weight rows there are also zero).
    xm = xn * s1p + shift

    # 1x1 conv (+ bias) == per-token matmul on the MXU, f32 accumulation.
    y = jnp.dot(xm.astype(wc_ref.dtype), wc_ref[...],
                preferred_element_type=jnp.float32) + bc_ref[...]
    o_ref[0] = y.astype(o_ref.dtype)


def final_layer(x, c, w_ada, b_ada, w_conv, b_conv, *,
                tile_n=512, eps=1e-6, single_buffer_weights=True):
    """x: (B, N, C);  c: (B, 1, C);  w_ada: (2C, C);  b_ada: (2C,);
    w_conv: (C_out, C, 1, 1);  b_conv: (C_out,).  Returns (B, N, C_out)."""
    B, N, C = x.shape
    C_out = w_conv.shape[0]

    # ---- adaLN conditioning hoisted out of the kernel (tiny M=1 matmul). ----
    cf = c.astype(jnp.float32).reshape(B, 1, C)
    s = cf * jax.nn.sigmoid(cf)                                          # SiLU
    mod = s @ jnp.asarray(w_ada, jnp.float32).T + jnp.asarray(b_ada, jnp.float32)
    shift, scale = mod[..., :C], mod[..., C:]
    # Pack [shift ; 1+scale] -> (B, 2, C) so the kernel fetches one block/batch.
    mod_pack = jnp.concatenate([shift, 1.0 + scale], axis=1)             # (B, 2, C)

    # ---- pad channels to lane width (128); tokens only up to the tile size. ----
    Cp = _round_up(C, 128)
    Cop = _round_up(C_out, 128)

    itemsize = jnp.dtype(x.dtype).itemsize
    # Shrink tile_n so double-buffered x + out tiles stay well inside a VMEM
    # budget that is safe on every generation (v7x: 64 MiB physical).
    budget = 24 << 20
    per_tok = 2 * (Cp + Cop) * max(itemsize, 4)
    tile_n = max(8, min(tile_n, budget // per_tok) // 8 * 8)
    tile_n = min(tile_n, _round_up(N, 8))
    Np = _round_up(N, tile_n)

    xp = x if (Np == N and Cp == C) else jnp.pad(
        x, ((0, 0), (0, Np - N), (0, Cp - C)))
    mod_p = mod_pack if Cp == C else jnp.pad(
        mod_pack, ((0, 0), (0, 0), (0, Cp - C)))

    wc = jnp.asarray(w_conv, jnp.float32).reshape(C_out, C).T.astype(x.dtype)
    if Cp != C or Cop != C_out:
        wc = jnp.pad(wc, ((0, Cp - C), (0, Cop - C_out)))                # (Cp, Cop)
    bc = jnp.asarray(b_conv, jnp.float32)
    if Cop != C_out:
        bc = jnp.pad(bc, (0, Cop - C_out))
    bc = bc.reshape(1, Cop)

    grid = (B, Np // tile_n)

    # Explicit VMEM limit with headroom (v5e scoped default is only 16 MiB).
    need = (2 * tile_n * Cp * itemsize          # x tile, double buffered
            + 2 * tile_n * Cop * itemsize       # out tile, double buffered
            + 4 * 2 * Cp + 4 * Cop              # [shift;1+scale] / bias
            + Cp * Cop * itemsize)              # conv weight
    vmem_limit = int(min(max(2 * need + (2 << 20), 16 << 20), 64 << 20))

    kernel = functools.partial(_final_layer_kernel, inv_c=1.0 / C, eps=eps)

    def build(single_buffered):
        w_kw = dict(pipeline_mode=pl.Buffered(1)) if single_buffered else {}
        return pl.pallas_call(
            kernel,
            out_shape=jax.ShapeDtypeStruct((B, Np, Cop), x.dtype),
            grid_spec=pltpu.PrefetchScalarGridSpec(
                num_scalar_prefetch=0,
                grid=grid,
                in_specs=[
                    pl.BlockSpec((1, tile_n, Cp), lambda b, n: (b, n, 0)),   # x tile
                    pl.BlockSpec((1, 2, Cp), lambda b, n: (b, 0, 0)),        # [shift;1+scale]
                    pl.BlockSpec((Cp, Cop), lambda b, n: (0, 0), **w_kw),    # conv W
                    pl.BlockSpec((1, Cop), lambda b, n: (0, 0), **w_kw),     # conv b
                ],
                out_specs=pl.BlockSpec((1, tile_n, Cop), lambda b, n: (b, n, 0)),
            ),
            compiler_params=pltpu.CompilerParams(
                dimension_semantics=("parallel", "parallel"),
                vmem_limit_bytes=vmem_limit),
        )

    args = (xp, mod_p, wc, bc)
    if single_buffer_weights:
        try:
            out = jax.block_until_ready(build(True)(*args))
        except Exception:
            # Fallback: if this JAX/Mosaic build rejects buffer_count=1 the
            # default double buffering is functionally identical.
            out = build(False)(*args)
    else:
        out = build(False)(*args)

    if Np == N and Cop == C_out:
        return out
    return out[:, :N, :C_out]


def _reference(x, c, w_ada, b_ada, w_conv, b_conv, eps=1e-6):
    # Plain-JAX replica of the PyTorch forward for verification.
    B, N, C = x.shape
    s = c * jax.nn.sigmoid(c)
    mod = s @ w_ada.T + b_ada
    shift, scale = mod[..., :C], mod[..., C:]
    mu = x.mean(-1, keepdims=True)
    var = ((x - mu) ** 2).mean(-1, keepdims=True)
    xn = (x - mu) / jnp.sqrt(var + eps)
    xm = xn * (1.0 + scale) + shift
    w = w_conv.reshape(w_conv.shape[0], C)
    return xm @ w.T + b_conv


if __name__ == "__main__":
    # Small shapes: model_channels = out_channels = 32 (the module's final
    # reshape(B, C, H*W) requires out_channels == model_channels), H = W = 8.
    B, C, H, W = 2, 32, 8, 8
    N = H * W

    key = jax.random.PRNGKey(0)
    kx, kc, kwa, kba, kwc, kbc = jax.random.split(key, 6)

    x = jax.random.normal(kx, (B, N, C), dtype=jnp.float32)
    c = jax.random.normal(kc, (B, 1, C), dtype=jnp.float32)

    # Deterministic synthetic parameters (shapes as in the module's __init__).
    w_ada = jax.random.normal(kwa, (2 * C, C), dtype=jnp.float32) * (1.0 / np.sqrt(C))
    b_ada = jax.random.normal(kba, (2 * C,), dtype=jnp.float32) * 0.02
    w_conv = jax.random.normal(kwc, (C, C, 1, 1), dtype=jnp.float32) * (1.0 / np.sqrt(C))
    b_conv = jax.random.normal(kbc, (C,), dtype=jnp.float32) * 0.02

    out = jax.block_until_ready(final_layer(x, c, w_ada, b_ada, w_conv, b_conv))
    ref = _reference(x, c, w_ada, b_ada, w_conv, b_conv)
    np.testing.assert_allclose(np.asarray(out), np.asarray(ref), rtol=1e-4, atol=1e-4)

    # Also exercise the N-padding path (token count not a multiple of 8/tile).
    N2 = 7 * 7
    x2 = jax.random.normal(kx, (B, N2, C), dtype=jnp.float32)
    out2 = jax.block_until_ready(final_layer(x2, c, w_ada, b_ada, w_conv, b_conv))
    ref2 = _reference(x2, c, w_ada, b_ada, w_conv, b_conv)
    np.testing.assert_allclose(np.asarray(out2), np.asarray(ref2), rtol=1e-4, atol=1e-4)

    print("KERNEL_OK")
</pallas_src>

<mosaic_0001>
module attributes {stable_mosaic.version = 11 : i64} {
  func.func @_final_layer_kernel(%arg0: i32, %arg1: i32, %arg2: memref<1x64x128xf32, #tpu.memory_space<vmem>>, %arg3: memref<1x2x128xf32, #tpu.memory_space<vmem>>, %arg4: memref<128x128xf32, #tpu.memory_space<vmem>>, %arg5: memref<1x128xf32, #tpu.memory_space<vmem>>, %arg6: memref<1x64x128xf32, #tpu.memory_space<vmem>>) attributes {dimension_semantics = [#tpu.dimension_semantics<parallel>, #tpu.dimension_semantics<parallel>], iteration_bounds = array<i64: 2, 1>, scalar_prefetch = 0 : i64, scratch_operands = 0 : i64, tpu.core_type = #tpu.core_type<tc>, window_params = [{transform_indices = @transform_0, window_bounds = array<i64: 1, 64, 128>}, {transform_indices = @transform_1, window_bounds = array<i64: 1, 2, 128>}, {pipeline_mode = #tpu.pipeline_mode<synchronous>, transform_indices = @transform_2, window_bounds = array<i64: 128, 128>}, {pipeline_mode = #tpu.pipeline_mode<synchronous>, transform_indices = @transform_3, window_bounds = array<i64: 1, 128>}, {transform_indices = @transform_4, window_bounds = array<i64: 1, 64, 128>}]} {
    %c0 = arith.constant 0 : index
    %c0_0 = arith.constant 0 : index
    %c0_1 = arith.constant 0 : index
    %0 = vector.load %arg2[%c0, %c0_0, %c0_1] : memref<1x64x128xf32, #tpu.memory_space<vmem>>, vector<1x64x128xf32>
    %1 = vector.shape_cast %0 : vector<1x64x128xf32> to vector<64x128xf32>
    %c0_2 = arith.constant 0 : index
    %c0_3 = arith.constant 0 : index
    %c0_4 = arith.constant 0 : index
    %2 = vector.load %arg3[%c0_2, %c0_3, %c0_4] : memref<1x2x128xf32, #tpu.memory_space<vmem>>, vector<1x1x128xf32>
    %3 = vector.shape_cast %2 : vector<1x1x128xf32> to vector<1x128xf32>
    %c0_5 = arith.constant 0 : index
    %c1 = arith.constant 1 : index
    %c0_6 = arith.constant 0 : index
    %4 = vector.load %arg3[%c0_5, %c1, %c0_6] : memref<1x2x128xf32, #tpu.memory_space<vmem>>, vector<1x1x128xf32>
    %5 = vector.shape_cast %4 : vector<1x1x128xf32> to vector<1x128xf32>
    %cst = arith.constant dense<0.000000e+00> : vector<64xf32>
    %6 = vector.multi_reduction <add>, %1, %cst [1] : vector<64x128xf32> to vector<64xf32>
    %7 = vector.shape_cast %6 : vector<64xf32> to vector<64x1xf32>
    %cst_7 = arith.constant 3.125000e-02 : f32
    %8 = vector.broadcast %cst_7 : f32 to vector<64x1xf32>
    %9 = arith.mulf %7, %8 : vector<64x1xf32>
    %10 = arith.mulf %1, %1 : vector<64x128xf32>
    %cst_8 = arith.constant dense<0.000000e+00> : vector<64xf32>
    %11 = vector.multi_reduction <add>, %10, %cst_8 [1] : vector<64x128xf32> to vector<64xf32>
    %12 = vector.shape_cast %11 : vector<64xf32> to vector<64x1xf32>
    %cst_9 = arith.constant 3.125000e-02 : f32
    %13 = vector.broadcast %cst_9 : f32 to vector<64x1xf32>
    %14 = arith.mulf %12, %13 : vector<64x1xf32>
    %15 = arith.mulf %9, %9 : vector<64x1xf32>
    %16 = arith.subf %14, %15 : vector<64x1xf32>
    %17 = vector.broadcast %9 : vector<64x1xf32> to vector<64x128xf32>
    %18 = arith.subf %1, %17 : vector<64x128xf32>
    %cst_10 = arith.constant 0.000000e+00 : f32
    %19 = vector.broadcast %cst_10 : f32 to vector<64x1xf32>
    %20 = arith.maximumf %16, %19 : vector<64x1xf32>
    %cst_11 = arith.constant 9.99999997E-7 : f32
    %21 = vector.broadcast %cst_11 : f32 to vector<64x1xf32>
    %22 = arith.addf %20, %21 : vector<64x1xf32>
    %23 = math.rsqrt %22 : vector<64x1xf32>
    %24 = vector.broadcast %23 : vector<64x1xf32> to vector<64x128xf32>
    %25 = arith.mulf %18, %24 : vector<64x128xf32>
    %26 = vector.broadcast %5 : vector<1x128xf32> to vector<64x128xf32>
    %27 = arith.mulf %25, %26 : vector<64x128xf32>
    %28 = vector.broadcast %3 : vector<1x128xf32> to vector<64x128xf32>
    %29 = arith.addf %27, %28 : vector<64x128xf32>
    %c0_12 = arith.constant 0 : index
    %c0_13 = arith.constant 0 : index
    %30 = vector.load %arg4[%c0_12, %c0_13] : memref<128x128xf32, #tpu.memory_space<vmem>>, vector<128x128xf32>
    %cst_14 = arith.constant dense<0.000000e+00> : vector<64x128xf32>
    %31 = tpu.matmul %29, %30, %cst_14 {dimension_numbers = #tpu.dot_dimension_numbers<[1], [0], [0], [1], [0, 0, 1, 1], [], []>} : vector<64x128xf32>, vector<128x128xf32>, vector<64x128xf32> -> vector<64x128xf32>
    %c0_15 = arith.constant 0 : index
    %c0_16 = arith.constant 0 : index
    %32 = vector.load %arg5[%c0_15, %c0_16] : memref<1x128xf32, #tpu.memory_space<vmem>>, vector<1x128xf32>
    %33 = vector.broadcast %32 : vector<1x128xf32> to vector<64x128xf32>
    %34 = arith.addf %31, %33 : vector<64x128xf32>
    %c0_17 = arith.constant 0 : index
    %c0_18 = arith.constant 0 : index
    %c0_19 = arith.constant 0 : index
    %35 = vector.load %arg6[%c0_17, %c0_18, %c0_19] : memref<1x64x128xf32, #tpu.memory_space<vmem>>, vector<1x64x128xf32>
    %36 = vector.shape_cast %35 : vector<1x64x128xf32> to vector<64x128xf32>
    %37 = vector.shape_cast %34 : vector<64x128xf32> to vector<1x64x128xf32>
    tpu.vector_store %arg6[%c0_17, %c0_18, %c0_19], %37 {strides = array<i32>} : memref<1x64x128xf32, #tpu.memory_space<vmem>>, vector<1x64x128xf32>,
    return
  }
  func.func @transform_0(%arg0: i32, %arg1: i32) -> (i32, i32, i32) {
    %c0_i32 = arith.constant 0 : i32
    %c0_i32_0 = arith.constant 0 : i32
    return %arg0, %arg1, %c0_i32 : i32, i32, i32
  }
  func.func @transform_1(%arg0: i32, %arg1: i32) -> (i32, i32, i32) {
    %c0_i32 = arith.constant 0 : i32
    %c0_i32_0 = arith.constant 0 : i32
    %c0_i32_1 = arith.constant 0 : i32
    return %arg0, %c0_i32, %c0_i32_0 : i32, i32, i32
  }
  func.func @transform_2(%arg0: i32, %arg1: i32) -> (i32, i32) {
    %c0_i32 = arith.constant 0 : i32
    %c0_i32_0 = arith.constant 0 : i32
    %c0_i32_1 = arith.constant 0 : i32
    return %c0_i32, %c0_i32_0 : i32, i32
  }
  func.func @transform_3(%arg0: i32, %arg1: i32) -> (i32, i32) {
    %c0_i32 = arith.constant 0 : i32
    %c0_i32_0 = arith.constant 0 : i32
    %c0_i32_1 = arith.constant 0 : i32
    return %c0_i32, %c0_i32_0 : i32, i32
  }
  func.func @transform_4(%arg0: i32, %arg1: i32) -> (i32, i32, i32) {
    %c0_i32 = arith.constant 0 : i32
    %c0_i32_0 = arith.constant 0 : i32
    return %arg0, %arg1, %c0_i32 : i32, i32, i32
  }
}

module attributes {stable_mosaic.version = 11 : i64} {
  func.func @_final_layer_kernel(%arg0: i32, %arg1: i32, %arg2: memref<1x64x128xf32, #tpu.memory_space<vmem>>, %arg3: memref<1x2x128xf32, #tpu.memory_space<vmem>>, %arg4: memref<128x128xf32, #tpu.memory_space<vmem>>, %arg5: memref<1x128xf32, #tpu.memory_space<vmem>>, %arg6: memref<1x64x128xf32, #tpu.memory_space<vmem>>) attributes {dimension_semantics = [#tpu.dimension_semantics<parallel>, #tpu.dimension_semantics<parallel>], iteration_bounds = array<i64: 2, 1>, scalar_prefetch = 0 : i64, scratch_operands = 0 : i64, tpu.core_type = #tpu.core_type<tc>, window_params = [{transform_indices = @transform_0, window_bounds = array<i64: 1, 64, 128>}, {transform_indices = @transform_1, window_bounds = array<i64: 1, 2, 128>}, {pipeline_mode = #tpu.pipeline_mode<synchronous>, transform_indices = @transform_2, window_bounds = array<i64: 128, 128>}, {pipeline_mode = #tpu.pipeline_mode<synchronous>, transform_indices = @transform_3, window_bounds = array<i64: 1, 128>}, {transform_indices = @transform_4, window_bounds = array<i64: 1, 64, 128>}]} {
    %c0 = arith.constant 0 : index
    %c0_0 = arith.constant 0 : index
    %c0_1 = arith.constant 0 : index
    %0 = vector.load %arg2[%c0, %c0_0, %c0_1] : memref<1x64x128xf32, #tpu.memory_space<vmem>>, vector<1x64x128xf32>
    %1 = vector.shape_cast %0 : vector<1x64x128xf32> to vector<64x128xf32>
    %c0_2 = arith.constant 0 : index
    %c0_3 = arith.constant 0 : index
    %c0_4 = arith.constant 0 : index
    %2 = vector.load %arg3[%c0_2, %c0_3, %c0_4] : memref<1x2x128xf32, #tpu.memory_space<vmem>>, vector<1x1x128xf32>
    %3 = vector.shape_cast %2 : vector<1x1x128xf32> to vector<1x128xf32>
    %c0_5 = arith.constant 0 : index
    %c1 = arith.constant 1 : index
    %c0_6 = arith.constant 0 : index
    %4 = vector.load %arg3[%c0_5, %c1, %c0_6] : memref<1x2x128xf32, #tpu.memory_space<vmem>>, vector<1x1x128xf32>
    %5 = vector.shape_cast %4 : vector<1x1x128xf32> to vector<1x128xf32>
    %cst = arith.constant dense<0.000000e+00> : vector<64xf32>
    %6 = vector.multi_reduction <add>, %1, %cst [1] : vector<64x128xf32> to vector<64xf32>
    %7 = vector.shape_cast %6 : vector<64xf32> to vector<64x1xf32>
    %cst_7 = arith.constant 3.125000e-02 : f32
    %8 = vector.broadcast %cst_7 : f32 to vector<64x1xf32>
    %9 = arith.mulf %7, %8 : vector<64x1xf32>
    %10 = arith.mulf %1, %1 : vector<64x128xf32>
    %cst_8 = arith.constant dense<0.000000e+00> : vector<64xf32>
    %11 = vector.multi_reduction <add>, %10, %cst_8 [1] : vector<64x128xf32> to vector<64xf32>
    %12 = vector.shape_cast %11 : vector<64xf32> to vector<64x1xf32>
    %cst_9 = arith.constant 3.125000e-02 : f32
    %13 = vector.broadcast %cst_9 : f32 to vector<64x1xf32>
    %14 = arith.mulf %12, %13 : vector<64x1xf32>
    %15 = arith.mulf %9, %9 : vector<64x1xf32>
    %16 = arith.subf %14, %15 : vector<64x1xf32>
    %17 = vector.broadcast %9 : vector<64x1xf32> to vector<64x128xf32>
    %18 = arith.subf %1, %17 : vector<64x128xf32>
    %cst_10 = arith.constant 0.000000e+00 : f32
    %19 = vector.broadcast %cst_10 : f32 to vector<64x1xf32>
    %20 = arith.maximumf %16, %19 : vector<64x1xf32>
    %cst_11 = arith.constant 9.99999997E-7 : f32
    %21 = vector.broadcast %cst_11 : f32 to vector<64x1xf32>
    %22 = arith.addf %20, %21 : vector<64x1xf32>
    %23 = math.rsqrt %22 : vector<64x1xf32>
    %24 = vector.broadcast %23 : vector<64x1xf32> to vector<64x128xf32>
    %25 = arith.mulf %18, %24 : vector<64x128xf32>
    %26 = vector.broadcast %5 : vector<1x128xf32> to vector<64x128xf32>
    %27 = arith.mulf %25, %26 : vector<64x128xf32>
    %28 = vector.broadcast %3 : vector<1x128xf32> to vector<64x128xf32>
    %29 = arith.addf %27, %28 : vector<64x128xf32>
    %c0_12 = arith.constant 0 : index
    %c0_13 = arith.constant 0 : index
    %30 = vector.load %arg4[%c0_12, %c0_13] : memref<128x128xf32, #tpu.memory_space<vmem>>, vector<128x128xf32>
    %cst_14 = arith.constant dense<0.000000e+00> : vector<64x128xf32>
    %31 = tpu.matmul %29, %30, %cst_14 {dimension_numbers = #tpu.dot_dimension_numbers<[1], [0], [0], [1], [0, 0, 1, 1], [], []>} : vector<64x128xf32>, vector<128x128xf32>, vector<64x128xf32> -> vector<64x128xf32>
    %c0_15 = arith.constant 0 : index
    %c0_16 = arith.constant 0 : index
    %32 = vector.load %arg5[%c0_15, %c0_16] : memref<1x128xf32, #tpu.memory_space<vmem>>, vector<1x128xf32>
    %33 = vector.broadcast %32 : vector<1x128xf32> to vector<64x128xf32>
    %34 = arith.addf %31, %33 : vector<64x128xf32>
    %c0_17 = arith.constant 0 : index
    %c0_18 = arith.constant 0 : index
    %c0_19 = arith.constant 0 : index
    %35 = vector.load %arg6[%c0_17, %c0_18, %c0_19] : memref<1x64x128xf32, #tpu.memory_space<vmem>>, vector<1x64x128xf32>
    %36 = vector.shape_cast %35 : vector<1x64x128xf32> to vector<64x128xf32>
    %37 = vector.shape_cast %34 : vector<64x128xf32> to vector<1x64x128xf32>
    tpu.vector_store %arg6[%c0_17, %c0_18, %c0_19], %37 {strides = array<i32>} : memref<1x64x128xf32, #tpu.memory_space<vmem>>, vector<1x64x128xf32>,
    return
  }
  func.func @transform_0(%arg0: i32, %arg1: i32) -> (i32, i32, i32) {
    %c0_i32 = arith.constant 0 : i32
    %c0_i32_0 = arith.constant 0 : i32
    return %arg0, %arg1, %c0_i32 : i32, i32, i32
  }
  func.func @transform_1(%arg0: i32, %arg1: i32) -> (i32, i32, i32) {
    %c0_i32 = arith.constant 0 : i32
    %c0_i32_0 = arith.constant 0 : i32
    %c0_i32_1 = arith.constant 0 : i32
    return %arg0, %c0_i32, %c0_i32_0 : i32, i32, i32
  }
  func.func @transform_2(%arg0: i32, %arg1: i32) -> (i32, i32) {
    %c0_i32 = arith.constant 0 : i32
    %c0_i32_0 = arith.constant 0 : i32
    %c0_i32_1 = arith.constant 0 : i32
    return %c0_i32, %c0_i32_0 : i32, i32
  }
  func.func @transform_3(%arg0: i32, %arg1: i32) -> (i32, i32) {
    %c0_i32 = arith.constant 0 : i32
    %c0_i32_0 = arith.constant 0 : i32
    %c0_i32_1 = arith.constant 0 : i32
    return %c0_i32, %c0_i32_0 : i32, i32
  }
  func.func @transform_4(%arg0: i32, %arg1: i32) -> (i32, i32, i32) {
    %c0_i32 = arith.constant 0 : i32
    %c0_i32_0 = arith.constant 0 : i32
    return %arg0, %arg1, %c0_i32 : i32, i32, i32
  }
}

</mosaic_0001>

<llo_original>
// kernel: tpu_custom_call.1
$region0: #{tpu_custom_call.1}
  #allocation0 [shape = 'u32[]', space=smem, size = 0x4, offset = 0x4, fixed_abs, tag = 'smem constant byte address 0x4 - core index']
  #allocation1 [shape = 'u32[72,128]{1,0:T(1,128)}', space=vmem, size = 0x9000, scoped, tag = 'internal scratch']
  %s0 = inlined_call_operand.hbm [shape: f32[2,64,128], index: 0, kind: input, shape index: {}]
  %s1 = inlined_call_operand.hbm [shape: f32[2,2,128], index: 1, kind: input, shape index: {}]
  %s2 = inlined_call_operand.hbm [shape: f32[128,128], index: 2, kind: input, shape index: {}]
  %s3 = inlined_call_operand.vmem [shape: f32[1,128], index: 3, kind: input, shape index: {}]
  %s4 = inlined_call_operand.hbm [shape: f32[2,64,128], index: 4, kind: output, shape index: {}]
  %s5 = sld [smem:[#allocation0]]
  $region61: #{tpu_custom_call.1} parent=0
    _
  %s7 = ssub.s32 1, %s5
  %s8 = scalar_select 0, %s7, %s5
  $region1: #{tpu_custom_call.1} parent=0
    #allocation2 [shape = 'u8[65536]{0}', space=vmem, size = 0x10000, scoped, tag = 'input window, operand 0']
    #allocation3 [shape = 's32[2]{0}', space=sflag, size = 0x8, scoped, tag = 'scoped memory for tpu_custom_call.1']
    #allocation4 [shape = 's32[2]{0}', space=sflag, size = 0x8, scoped, tag = 'scoped memory for tpu_custom_call.1']
    #allocation5 [shape = 'u8[2048]{0}', space=vmem, size = 0x800, scoped, tag = 'input window, operand 1']
    #allocation6 [shape = 's32[2]{0}', space=sflag, size = 0x8, scoped, tag = 'scoped memory for tpu_custom_call.1']
    #allocation7 [shape = 'u8[65536]{0}', space=vmem, size = 0x10000, scoped, tag = 'input window, operand 2, single buffered']
    #allocation8 [shape = 'u8[65536]{0}', space=vmem, size = 0x10000, scoped, tag = 'output window, operand 0']
    %9 = vsyncpa [#allocation3], 0
    %s10 = scalar_lea.sflag [#allocation3], 1
    %11 = vsyncpa %s10, 0
    %12 = vsyncpa [#allocation6], 0
    %s13 = scalar_lea.sflag [#allocation6], 1
    %14 = vsyncpa %s13, 0
    %15 = vsyncpa [#allocation4], 0
    %s16 = scalar_lea.sflag [#allocation4], 1
    %17 = vsyncpa %s16, 0
    loop: start=0, step=1, limit=4
    $region2: #{tpu_custom_call.1} parent=1 // loop_pre_header
      _
    $region3: #{tpu_custom_call.1} parent=1 // loop_header
      %s19 = sphi 0, %s23
      %p20 = scmp.ge.s32.totalorder %s19, 4
      %s26 = sphi 0, %s38
      %s27 = sphi 0, %s34
      %s28 = sphi 0, %s26
      %s29 = sphi 0, %s27
      %s30 = sphi 0, %s28
      %s31 = sphi 0, %s29
      %s43 = sphi 0, %s45
      %s46 = sphi 0, %s43
      %s47 = sphi 0, %s46
      %s63 = sphi 0, %s47
      %s69 = sphi 0, %s71
      %s72 = sphi 0, %s69
      %s73 = sphi 0, %s72
      %s89 = sphi 0, %s73
      %s93 = sphi 0, %s93
      %s95 = sphi 0, %s93
      %s96 = sphi 0, %s95
      %s110 = sphi 0, %s96
      %s114 = sphi 0, %s114
      %s116 = sphi 0, %s114
      %s117 = sphi 0, %s116
      %s131 = sphi 0, %s117
      %s139 = sphi 0, %s141
      %s142 = sphi 0, %s139
      %s143 = sphi 0, %s142
      %s159 = sphi 0, %s143
    $region4: #{tpu_custom_call.1} parent=1 // loop_header_branch
      %22 = sbr.rel (%p20) target = $region8
    $region5: #{tpu_custom_call.1} parent=1 // loop_body
      %s24 = ssub.s32 %s19, 1
      %s25 = ssub.s32 %s19, 2
      %s32 = sadd.s32 1, %s27
      %p33 = scmp.ge.s32.totalorder %s32, 1
      %s34 = scalar_select %p33, 0, %s32
      %s35 = sadd.s32 1, %s26
      %s36 = scalar_select %p33, %s35, %s26
      %p37 = scmp.ge.s32.totalorder %s36, 2
      %s38 = scalar_select %p37, 0, %s36
      %s39 = ssub.s32 %s26, %s38
      %s40 = ssub.s32 %s27, %s34
      %s41 = sor.u32 %s39, %s40
      %p42 = scmp.eq.s32.totalorder %s41, 0
      %s44 = sadd.s32 %s43, 1
      %s45 = scalar_select %p42, %s43, %s44
      %p48 = pneg %p42
      %p49 = scmp.eq.s32.totalorder %s19, 1
      %p50 = por %p48, %p49
      %p51 = scmp.ne.s32.totalorder %s43, %s46
      %p52 = scmp.eq.s32.totalorder %s19, 0
      %p53 = por %p51, %p52
      %p54 = scmp.ne.s32.totalorder %s43, %s46
      %p55 = scmp.eq.s32.totalorder %s24, 1
      %p56 = por %p54, %p55
      %p57 = scmp.ne.s32.totalorder %s46, %s47
      %p58 = scmp.eq.s32.totalorder %s24, 0
      %p59 = por %p57, %p58
      %p60 = scmp.ne.s32.totalorder %s46, %s47
      %p61 = scmp.eq.s32.totalorder %s25, 1
      %p62 = por %p60, %p61
      %p64 = scmp.ne.s32.totalorder %s47, %s63
      %p65 = scmp.eq.s32.totalorder %s25, 0
      %p66 = por %p64, %p65
      %s67 = ssub.s32 %s26, %s38
      %p68 = scmp.eq.s32.totalorder %s67, 0
      %s70 = sadd.s32 %s69, 1
      %s71 = scalar_select %p68, %s69, %s70
      %p74 = pneg %p68
      %p75 = scmp.eq.s32.totalorder %s19, 1
      %p76 = por %p74, %p75
      %p77 = scmp.ne.s32.totalorder %s69, %s72
      %p78 = scmp.eq.s32.totalorder %s19, 0
      %p79 = por %p77, %p78
      %p80 = scmp.ne.s32.totalorder %s69, %s72
      %p81 = scmp.eq.s32.totalorder %s24, 1
      %p82 = por %p80, %p81
      %p83 = scmp.ne.s32.totalorder %s72, %s73
      %p84 = scmp.eq.s32.totalorder %s24, 0
      %p85 = por %p83, %p84
      %p86 = scmp.ne.s32.totalorder %s72, %s73
      %p87 = scmp.eq.s32.totalorder %s25, 1
      %p88 = por %p86, %p87
      %p90 = scmp.ne.s32.totalorder %s73, %s89
      %p91 = scmp.eq.s32.totalorder %s25, 0
      %p92 = por %p90, %p91
      %s94 = sadd.s32 %s93, 1
      %p97 = scmp.eq.s32.totalorder %s19, 1
      %p98 = scmp.ne.s32.totalorder %s93, %s95
      %p99 = scmp.eq.s32.totalorder %s19, 0
      %p100 = por %p98, %p99
      %p101 = scmp.ne.s32.totalorder %s93, %s95
      %p102 = scmp.eq.s32.totalorder %s24, 1
      %p103 = por %p101, %p102
      %p104 = scmp.ne.s32.totalorder %s95, %s96
      %p105 = scmp.eq.s32.totalorder %s24, 0
      %p106 = por %p104, %p105
      %p107 = scmp.ne.s32.totalorder %s95, %s96
      %p108 = scmp.eq.s32.totalorder %s25, 1
      %p109 = por %p107, %p108
      %p111 = scmp.ne.s32.totalorder %s96, %s110
      %p112 = scmp.eq.s32.totalorder %s25, 0
      %p113 = por %p111, %p112
      %s115 = sadd.s32 %s114, 1
      %p118 = scmp.eq.s32.totalorder %s19, 1
      %p119 = scmp.ne.s32.totalorder %s114, %s116
      %p120 = scmp.eq.s32.totalorder %s19, 0
      %p121 = por %p119, %p120
      %p122 = scmp.ne.s32.totalorder %s114, %s116
      %p123 = scmp.eq.s32.totalorder %s24, 1
      %p124 = por %p122, %p123
      %p125 = scmp.ne.s32.totalorder %s116, %s117
      %p126 = scmp.eq.s32.totalorder %s24, 0
      %p127 = por %p125, %p126
      %p128 = scmp.ne.s32.totalorder %s116, %s117
      %p129 = scmp.eq.s32.totalorder %s25, 1
      %p130 = por %p128, %p129
      %p132 = scmp.ne.s32.totalorder %s117, %s131
      %p133 = scmp.eq.s32.totalorder %s25, 0
      %p134 = por %p132, %p133
      %s135 = ssub.s32 %s26, %s38
      %s136 = ssub.s32 %s27, %s34
      %s137 = sor.u32 %s135, %s136
      %p138 = scmp.eq.s32.totalorder %s137, 0
      %s140 = sadd.s32 %s139, 1
      %s141 = scalar_select %p138, %s139, %s140
      %p144 = pneg %p138
      %p145 = scmp.eq.s32.totalorder %s19, 1
      %p146 = por %p144, %p145
      %p147 = scmp.ne.s32.totalorder %s139, %s142
      %p148 = scmp.eq.s32.totalorder %s19, 0
      %p149 = por %p147, %p148
      %p150 = scmp.ne.s32.totalorder %s139, %s142
      %p151 = scmp.eq.s32.totalorder %s24, 1
      %p152 = por %p150, %p151
      %p153 = scmp.ne.s32.totalorder %s142, %s143
      %p154 = scmp.eq.s32.totalorder %s24, 0
      %p155 = por %p153, %p154
      %p156 = scmp.ne.s32.totalorder %s142, %s143
      %p157 = scmp.eq.s32.totalorder %s25, 1
      %p158 = por %p156, %p157
      %p160 = scmp.ne.s32.totalorder %s143, %s159
      %p161 = scmp.eq.s32.totalorder %s25, 0
      %p162 = por %p160, %p161
      %p163 = scmp.le.s32.totalorder 1, %s19
      %p164 = scmp.lt.s32.totalorder %s19, 3
      %p165 = pnand %p163, %p164
      %p166 = pneg %p165
      // Predicated region
      $region9: #{tpu_custom_call.1} parent=5 // pred_check
        _
      $region10: #{tpu_custom_call.1} parent=5 // pred_check_branch
        %168 = sbr.rel (%p165) target = $region12
      $region11: #{tpu_custom_call.1} parent=5 // pred_region
        %s169 = ssub.s32 %s19, 1
        // Predicated region
        $region13: #{tpu_custom_call.1} parent=11 // pred_check
          %p170 = pneg %p106
        $region14: #{tpu_custom_call.1} parent=11 // pred_check_branch
          %172 = sbr.rel (%p170) target = $region16
        $region15: #{tpu_custom_call.1} parent=11 // pred_region
          %174 = vsyncadd [#allocation6], 0
          %s175 = sshll.u32 %s2, 4
          %s176 = int_to_ptr.hbm [resolvable:$true] %s175
          %s177 = sshll.u32 [#allocation7], 4
          %s178 = int_to_ptr.vmem [resolvable:$true] %s177
          %183 = dma.hbm_to_vmem [thread:$0]  %s176, 2048, %s178, [#allocation6], 128, 128, 8
        $region16: #{tpu_custom_call.1} parent=11 // pred_fallthru
          _
        // Predicated region
        $region17: #{tpu_custom_call.1} parent=11 // pred_check
          %p184 = pneg %p127
        $region18: #{tpu_custom_call.1} parent=11 // pred_check_branch
          %186 = sbr.rel (%p184) target = $region20
        $region19: #{tpu_custom_call.1} parent=11 // pred_region
          _
        $region20: #{tpu_custom_call.1} parent=11 // pred_fallthru
          _
      $region12: #{tpu_custom_call.1} parent=5 // pred_fallthru
        _
      %p187 = scmp.lt.s32.totalorder %s19, 2
      // Predicated region
      $region21: #{tpu_custom_call.1} parent=5 // pred_check
        %p188 = pneg %p187
      $region22: #{tpu_custom_call.1} parent=5 // pred_check_branch
        %190 = sbr.rel (%p188) target = $region24
      $region23: #{tpu_custom_call.1} parent=5 // pred_region
        // Predicated region
        $region25: #{tpu_custom_call.1} parent=23 // pred_check
          %p191 = pneg %p53
        $region26: #{tpu_custom_call.1} parent=23 // pred_check_branch
          %193 = sbr.rel (%p191) target = $region28
        $region27: #{tpu_custom_call.1} parent=23 // pred_region
          %s194 = sand.u32 %s43, 1
          %s195 = scalar_lea.sflag [#allocation3], %s194
          %s196 = sand.u32 %s43, 1
          %s197 = smul.addr %s196, 64
          %s198 = scalar_lea.vmem [#allocation2], %s197
          %s199 = smul.u32 8, %s27
          %201 = vsyncadd %s195, 0
          %s202 = smul.addr %s26, 8
          %s203 = sadd.s32 %s199, %s202
          %s204 = smul.addr %s203, 8
          %s205 = scalar_lea.hbm %s0, %s204
          %s206 = sshll.u32 %s205, 4
          %s207 = int_to_ptr.hbm [resolvable:$true] %s206
          %s208 = sshll.u32 %s198, 4
          %s209 = int_to_ptr.vmem [resolvable:$true] %s208
          %214 = dma.hbm_to_vmem [thread:$0]  %s207, 1024, %s209, %s195, 128, 128, 8
        $region28: #{tpu_custom_call.1} parent=23 // pred_fallthru
          _
        // Predicated region
        $region29: #{tpu_custom_call.1} parent=23 // pred_check
          %p215 = pneg %p79
        $region30: #{tpu_custom_call.1} parent=23 // pred_check_branch
          %217 = sbr.rel (%p215) target = $region32
        $region31: #{tpu_custom_call.1} parent=23 // pred_region
          %s218 = sand.u32 %s19, 1
          %s219 = scalar_lea.sflag [#allocation6], %s218
          %s220 = sand.u32 %s69, 1
          %s221 = smul.addr %s220, 2
          %s222 = scalar_lea.vmem [#allocation5], %s221
          %224 = vsyncadd %s219, 0
          %s225 = smul.addr %s26, 2
          %s226 = scalar_lea.hbm %s1, %s225
          %s228 = sshll.u32 %s226, 4
          %s229 = int_to_ptr.hbm [resolvable:$true] %s228
          %s230 = sshll.u32 %s222, 4
          %s231 = int_to_ptr.vmem [resolvable:$true] %s230
          %233 = dma.hbm_to_vmem [thread:$0]  %s229, 32, %s231, %s219
        $region32: #{tpu_custom_call.1} parent=23 // pred_fallthru
          _
      $region24: #{tpu_custom_call.1} parent=5 // pred_fallthru
        _
      %p234 = scmp.le.s32.totalorder 1, %s19
      %p235 = scmp.lt.s32.totalorder %s19, 3
      %p236 = pnand %p234, %p235
      %p237 = pneg %p236
      // Predicated region
      $region33: #{tpu_custom_call.1} parent=5 // pred_check
        _
      $region34: #{tpu_custom_call.1} parent=5 // pred_check_branch
        %239 = sbr.rel (%p236) target = $region36
      $region35: #{tpu_custom_call.1} parent=5 // pred_region
        %s240 = ssub.s32 %s19, 1
        %s241 = sand.u32 %s46, 1
        %s242 = scalar_lea.sflag [#allocation3], %s241
        %s243 = sand.u32 %s46, 1
        %s244 = smul.addr %s243, 64
        %s245 = scalar_lea.vmem [#allocation2], %s244
        // Predicated region
        $region37: #{tpu_custom_call.1} parent=35 // pred_check
          %p246 = pneg %p59
        $region38: #{tpu_custom_call.1} parent=35 // pred_check_branch
          %248 = sbr.rel (%p246) target = $region40
        $region39: #{tpu_custom_call.1} parent=35 // pred_region
          %250 = dma.done %s242, 1024
        $region40: #{tpu_custom_call.1} parent=35 // pred_fallthru
          _
        %s251 = sand.u32 %s24, 1
        %s252 = scalar_lea.sflag [#allocation6], %s251
        %s253 = sand.u32 %s72, 1
        %s254 = smul.addr %s253, 2
        %s255 = scalar_lea.vmem [#allocation5], %s254
        // Predicated region
        $region41: #{tpu_custom_call.1} parent=35 // pred_check
          %p256 = pneg %p85
        $region42: #{tpu_custom_call.1} parent=35 // pred_check_branch
          %258 = sbr.rel (%p256) target = $region44
        $region43: #{tpu_custom_call.1} parent=35 // pred_region
          %260 = dma.done %s252, 32
        $region44: #{tpu_custom_call.1} parent=35 // pred_fallthru
          _
        // Predicated region
        $region45: #{tpu_custom_call.1} parent=35 // pred_check
          %p261 = pneg %p106
        $region46: #{tpu_custom_call.1} parent=35 // pred_check_branch
          %263 = sbr.rel (%p261) target = $region48
        $region47: #{tpu_custom_call.1} parent=35 // pred_region
          %265 = dma.done [#allocation6], 2048
        $region48: #{tpu_custom_call.1} parent=35 // pred_fallthru
          _
        %s266 = sand.u32 %s46, 1
        %s267 = scalar_lea.sflag [#allocation3], %s266
        %s268 = sand.u32 %s46, 1
        %s269 = smul.addr %s268, 64
        %s270 = scalar_lea.vmem [#allocation2], %s269
        %p271 = pneg %p59
        %p272 = pneg %p56
        %s273 = sand.u32 %s24, 1
        %s274 = scalar_lea.sflag [#allocation6], %s273
        %s275 = sand.u32 %s72, 1
        %s276 = smul.addr %s275, 2
        %s277 = scalar_lea.vmem [#allocation5], %s276
        %p278 = pneg %p85
        %p279 = pneg %p82
        %p280 = pneg %p106
        %p281 = pneg %p103
        %p282 = pneg %p127
        %p283 = pneg %p124
        %p284 = pneg %p155
        %p285 = pneg %p152
        %s286 = sand.u32 %s142, 1
        %s287 = scalar_lea.sflag [#allocation4], %s286
        %s288 = sand.u32 %s142, 1
        %s289 = smul.addr %s288, 64
        %s290 = scalar_lea.vmem [#allocation8], %s289
        %s291 = smul.u32 8, %s29
        %s292 = smul.u32 8, %s29
        %v293 = vld [vmem:[%s245] sm:$0xff]
        %v294 = vld [vmem:[%s245 + $0x8] sm:$0xff]
        %v295 = vld [vmem:[%s245 + $0x10] sm:$0xff]
        %v296 = vld [vmem:[%s245 + $0x18] sm:$0xff]
        %v297 = vld [vmem:[%s245 + $0x20] sm:$0xff]
        %v298 = vld [vmem:[%s245 + $0x28] sm:$0xff]
        %v299 = vld [vmem:[%s245 + $0x30] sm:$0xff]
        %v300 = vld [vmem:[%s245 + $0x38] sm:$0xff]
        %v301 = vld [vmem:[%s255] sm:$0x1]
        %v302 = vld [vmem:[%s255 + $0x1] sm:$0x1]
        %303 = vadd.xlane.f32.xlu0 %v293
        %v304 = vpop.xlane.xlu0 %303
        %305 = vadd.xlane.f32.xlu0 %v294
        %v306 = vpop.xlane.xlu0 %305
        %307 = vadd.xlane.f32.xlu0 %v295
        %v308 = vpop.xlane.xlu0 %307
        %309 = vadd.xlane.f32.xlu0 %v296
        %v310 = vpop.xlane.xlu0 %309
        %311 = vadd.xlane.f32.xlu0 %v297
        %v312 = vpop.xlane.xlu0 %311
        %313 = vadd.xlane.f32.xlu0 %v298
        %v314 = vpop.xlane.xlu0 %313
        %315 = vadd.xlane.f32.xlu0 %v299
        %v316 = vpop.xlane.xlu0 %315
        %317 = vadd.xlane.f32.xlu0 %v300
        %v318 = vpop.xlane.xlu0 %317
        %v319 = vmul.f32 %v304, 0.03125
        %v320 = vmul.f32 %v306, 0.03125
        %v321 = vmul.f32 %v308, 0.03125
        %v322 = vmul.f32 %v310, 0.03125
        %v323 = vmul.f32 %v312, 0.03125
        %v324 = vmul.f32 %v314, 0.03125
        %v325 = vmul.f32 %v316, 0.03125
        %v326 = vmul.f32 %v318, 0.03125
        %v327 = vmul.f32 %v293, %v293
        %v328 = vmul.f32 %v294, %v294
        %v329 = vmul.f32 %v295, %v295
        %v330 = vmul.f32 %v296, %v296
        %v331 = vmul.f32 %v297, %v297
        %v332 = vmul.f32 %v298, %v298
        %v333 = vmul.f32 %v299, %v299
        %v334 = vmul.f32 %v300, %v300
        %335 = vadd.xlane.f32.xlu0 %v327
        %v336 = vpop.xlane.xlu0 %335
        %337 = vadd.xlane.f32.xlu0 %v328
        %v338 = vpop.xlane.xlu0 %337
        %339 = vadd.xlane.f32.xlu0 %v329
        %v340 = vpop.xlane.xlu0 %339
        %341 = vadd.xlane.f32.xlu0 %v330
        %v342 = vpop.xlane.xlu0 %341
        %343 = vadd.xlane.f32.xlu0 %v331
        %v344 = vpop.xlane.xlu0 %343
        %345 = vadd.xlane.f32.xlu0 %v332
        %v346 = vpop.xlane.xlu0 %345
        %347 = vadd.xlane.f32.xlu0 %v333
        %v348 = vpop.xlane.xlu0 %347
        %349 = vadd.xlane.f32.xlu0 %v334
        %v350 = vpop.xlane.xlu0 %349
        %v351 = vmul.f32 %v336, 0.03125
        %v352 = vmul.f32 %v338, 0.03125
        %v353 = vmul.f32 %v340, 0.03125
        %v354 = vmul.f32 %v342, 0.03125
        %v355 = vmul.f32 %v344, 0.03125
        %v356 = vmul.f32 %v346, 0.03125
        %v357 = vmul.f32 %v348, 0.03125
        %v358 = vmul.f32 %v350, 0.03125
        %v359 = vmul.f32 %v319, %v319
        %v360 = vmul.f32 %v320, %v320
        %v361 = vmul.f32 %v321, %v321
        %v362 = vmul.f32 %v322, %v322
        %v363 = vmul.f32 %v323, %v323
        %v364 = vmul.f32 %v324, %v324
        %v365 = vmul.f32 %v325, %v325
        %v366 = vmul.f32 %v326, %v326
        %v367 = vsub.f32 %v351, %v359
        %v368 = vsub.f32 %v352, %v360
        %v369 = vsub.f32 %v353, %v361
        %v370 = vsub.f32 %v354, %v362
        %v371 = vsub.f32 %v355, %v363
        %v372 = vsub.f32 %v356, %v364
        %v373 = vsub.f32 %v357, %v365
        %v374 = vsub.f32 %v358, %v366
        %v375 = vsub.f32 %v293, %v319
        %v376 = vsub.f32 %v294, %v320
        %v377 = vsub.f32 %v295, %v321
        %v378 = vsub.f32 %v296, %v322
        %v379 = vsub.f32 %v297, %v323
        %v380 = vsub.f32 %v298, %v324
        %v381 = vsub.f32 %v299, %v325
        %v382 = vsub.f32 %v300, %v326
        %v383 = vmax.f32 %v367, 0.0
        %v384 = vmax.f32 %v368, 0.0
        %v385 = vmax.f32 %v369, 0.0
        %v386 = vmax.f32 %v370, 0.0
        %v387 = vmax.f32 %v371, 0.0
        %v388 = vmax.f32 %v372, 0.0
        %v389 = vmax.f32 %v373, 0.0
        %v390 = vmax.f32 %v374, 0.0
        %v391 = vadd.f32 %v383, 1e-06
        %v392 = vadd.f32 %v384, 1e-06
        %v393 = vadd.f32 %v385, 1e-06
        %v394 = vadd.f32 %v386, 1e-06
        %v395 = vadd.f32 %v387, 1e-06
        %v396 = vadd.f32 %v388, 1e-06
        %v397 = vadd.f32 %v389, 1e-06
        %v398 = vadd.f32 %v390, 1e-06
        %v399 = vrsqrt.pop %v391
        %v400 = vmul.f32 %v399, %v391
        %v401 = vmul.f32 %v400, %v399
        %v402 = vmul.f32 0.5, %v401
        %v403 = vsub.f32 1.5, %v402
        %v404 = vmul.f32 %v399, %v403
        %vm405 = vweird.f32 %v391
        %vm406 = vweird.f32 %v399
        %vm407 = vmor %vm405, %vm406
        %v408 = vsel %vm407, %v399, %v404
        %v409 = vrsqrt.pop %v392
        %v410 = vmul.f32 %v409, %v392
        %v411 = vmul.f32 %v410, %v409
        %v412 = vmul.f32 0.5, %v411
        %v413 = vsub.f32 1.5, %v412
        %v414 = vmul.f32 %v409, %v413
        %vm415 = vweird.f32 %v392
        %vm416 = vweird.f32 %v409
        %vm417 = vmor %vm415, %vm416
        %v418 = vsel %vm417, %v409, %v414
        %v419 = vrsqrt.pop %v393
        %v420 = vmul.f32 %v419, %v393
        %v421 = vmul.f32 %v420, %v419
        %v422 = vmul.f32 0.5, %v421
        %v423 = vsub.f32 1.5, %v422
        %v424 = vmul.f32 %v419, %v423
        %vm425 = vweird.f32 %v393
        %vm426 = vweird.f32 %v419
        %vm427 = vmor %vm425, %vm426
        %v428 = vsel %vm427, %v419, %v424
        %v429 = vrsqrt.pop %v394
        %v430 = vmul.f32 %v429, %v394
        %v431 = vmul.f32 %v430, %v429
        %v432 = vmul.f32 0.5, %v431
        %v433 = vsub.f32 1.5, %v432
        %v434 = vmul.f32 %v429, %v433
        %vm435 = vweird.f32 %v394
        %vm436 = vweird.f32 %v429
        %vm437 = vmor %vm435, %vm436
        %v438 = vsel %vm437, %v429, %v434
        %v439 = vrsqrt.pop %v395
        %v440 = vmul.f32 %v439, %v395
        %v441 = vmul.f32 %v440, %v439
        %v442 = vmul.f32 0.5, %v441
        %v443 = vsub.f32 1.5, %v442
        %v444 = vmul.f32 %v439, %v443
        %vm445 = vweird.f32 %v395
        %vm446 = vweird.f32 %v439
        %vm447 = vmor %vm445, %vm446
        %v448 = vsel %vm447, %v439, %v444
        %v449 = vrsqrt.pop %v396
        %v450 = vmul.f32 %v449, %v396
        %v451 = vmul.f32 %v450, %v449
        %v452 = vmul.f32 0.5, %v451
        %v453 = vsub.f32 1.5, %v452
        %v454 = vmul.f32 %v449, %v453
        %vm455 = vweird.f32 %v396
        %vm456 = vweird.f32 %v449
        %vm457 = vmor %vm455, %vm456
        %v458 = vsel %vm457, %v449, %v454
        %v459 = vrsqrt.pop %v397
        %v460 = vmul.f32 %v459, %v397
        %v461 = vmul.f32 %v460, %v459
        %v462 = vmul.f32 0.5, %v461
        %v463 = vsub.f32 1.5, %v462
        %v464 = vmul.f32 %v459, %v463
        %vm465 = vweird.f32 %v397
        %vm466 = vweird.f32 %v459
        %vm467 = vmor %vm465, %vm466
        %v468 = vsel %vm467, %v459, %v464
        %v469 = vrsqrt.pop %v398
        %v470 = vmul.f32 %v469, %v398
        %v471 = vmul.f32 %v470, %v469
        %v472 = vmul.f32 0.5, %v471
        %v473 = vsub.f32 1.5, %v472
        %v474 = vmul.f32 %v469, %v473
        %vm475 = vweird.f32 %v398
        %vm476 = vweird.f32 %v469
        %vm477 = vmor %vm475, %vm476
        %v478 = vsel %vm477, %v469, %v474
        %v479 = vmul.f32 %v375, %v408
        %v480 = vmul.f32 %v376, %v418
        %v481 = vmul.f32 %v377, %v428
        %v482 = vmul.f32 %v378, %v438
        %v483 = vmul.f32 %v379, %v448
        %v484 = vmul.f32 %v380, %v458
        %v485 = vmul.f32 %v381, %v468
        %v486 = vmul.f32 %v382, %v478
        %v487 = vperm.slane %v302, 0
        %v488 = vmul.f32 %v479, %v487
        %v489 = vmul.f32 %v480, %v487
        %v490 = vmul.f32 %v481, %v487
        %v491 = vmul.f32 %v482, %v487
        %v492 = vmul.f32 %v483, %v487
        %v493 = vmul.f32 %v484, %v487
        %v494 = vmul.f32 %v485, %v487
        %v495 = vmul.f32 %v486, %v487
        %v496 = vperm.slane %v301, 0
        %v497 = vadd.f32 %v488, %v496
        %v498 = vadd.f32 %v489, %v496
        %v499 = vadd.f32 %v490, %v496
        %v500 = vadd.f32 %v491, %v496
        %v501 = vadd.f32 %v492, %v496
        %v502 = vadd.f32 %v493, %v496
        %v503 = vadd.f32 %v494, %v496
        %v504 = vadd.f32 %v495, %v496
        %v505 = vld [vmem:[#allocation7] sm:$0xff]
        %v506 = vld [vmem:[#allocation7 + $0x8] sm:$0xff]
        %v507 = vld [vmem:[#allocation7 + $0x10] sm:$0xff]
        %v508 = vld [vmem:[#allocation7 + $0x18] sm:$0xff]
        %v509 = vld [vmem:[#allocation7 + $0x20] sm:$0xff]
        %v510 = vld [vmem:[#allocation7 + $0x28] sm:$0xff]
        %v511 = vld [vmem:[#allocation7 + $0x30] sm:$0xff]
        %v512 = vld [vmem:[#allocation7 + $0x38] sm:$0xff]
        %v513 = vld [vmem:[#allocation7 + $0x40] sm:$0xff]
        %v514 = vld [vmem:[#allocation7 + $0x48] sm:$0xff]
        %v515 = vld [vmem:[#allocation7 + $0x50] sm:$0xff]
        %v516 = vld [vmem:[#allocation7 + $0x58] sm:$0xff]
        %v517 = vld [vmem:[#allocation7 + $0x60] sm:$0xff]
        %v518 = vld [vmem:[#allocation7 + $0x68] sm:$0xff]
        %v519 = vld [vmem:[#allocation7 + $0x70] sm:$0xff]
        %v520 = vld [vmem:[#allocation7 + $0x78] sm:$0xff]
        %v521 = vld [vmem:[%s3] sm:$0x1]
        %v523 = vperm.slane %v521, 0
        %525 = vmatpush.msra.mxu0 %v520
        %526 = vmatpush.msra.mxu0 %v519
        %527 = vmatpush.msra.mxu0 %v518
        %528 = vmatpush.msra.mxu0 %v517
        %529 = vmatpush.msra.mxu0 %v516
        %530 = vmatpush.msra.mxu0 %v515
        %531 = vmatpush.msra.mxu0 %v514
        %532 = vmatpush.msra.mxu0 %v513
        %533 = vmatpush.msra.mxu0 %v512
        %534 = vmatpush.msra.mxu0 %v511
        %535 = vmatpush.msra.mxu0 %v510
        %536 = vmatpush.msra.mxu0 %v509
        %537 = vmatpush.msra.mxu0 %v508
        %538 = vmatpush.msra.mxu0 %v507
        %539 = vmatpush.msra.mxu0 %v506
        %540 = vmatpush.msra.mxu0 %v505
        %541 = vmatmul.f32.gmra.mxu0 %v497
        %v542 = vpop.f32.mrf.mxu0
        %v543 = vadd.f32 %v523, %v542
        %544 = vmatmul.f32.gmra.mxu0 %v498
        %v545 = vpop.f32.mrf.mxu0
        %v546 = vadd.f32 %v523, %v545
        %547 = vmatmul.f32.gmra.mxu0 %v499
        %v548 = vpop.f32.mrf.mxu0
        %v549 = vadd.f32 %v523, %v548
        %550 = vmatmul.f32.gmra.mxu0 %v500
        %v551 = vpop.f32.mrf.mxu0
        %v552 = vadd.f32 %v523, %v551
        %553 = vmatmul.f32.gmra.mxu0 %v501
        %v554 = vpop.f32.mrf.mxu0
        %v555 = vadd.f32 %v523, %v554
        %556 = vmatmul.f32.gmra.mxu0 %v502
        %v557 = vpop.f32.mrf.mxu0
        %v558 = vadd.f32 %v523, %v557
        %559 = vmatmul.f32.gmra.mxu0 %v503
        %v560 = vpop.f32.mrf.mxu0
        %v561 = vadd.f32 %v523, %v560
        %562 = vmatmul.f32.gmra.mxu0 %v504
        %v563 = vpop.f32.mrf.mxu0
        %v564 = vadd.f32 %v523, %v563
        %565 = vdwg.mxu0
        %566 = vst [vmem:[%s290] sm:$0xff] %v543
        %567 = vst [vmem:[%s290 + $0x8] sm:$0xff] %v546
        %568 = vst [vmem:[%s290 + $0x10] sm:$0xff] %v549
        %569 = vst [vmem:[%s290 + $0x18] sm:$0xff] %v552
        %570 = vst [vmem:[%s290 + $0x20] sm:$0xff] %v555
        %571 = vst [vmem:[%s290 + $0x28] sm:$0xff] %v558
        %572 = vst [vmem:[%s290 + $0x30] sm:$0xff] %v561
        %573 = vst [vmem:[%s290 + $0x38] sm:$0xff] %v564
        %s574 = sand.u32 %s142, 1
        %s575 = scalar_lea.sflag [#allocation4], %s574
        %s576 = sand.u32 %s142, 1
        %s577 = smul.addr %s576, 64
        %s578 = scalar_lea.vmem [#allocation8], %s577
        // Predicated region
        $region49: #{tpu_custom_call.1} parent=35 // pred_check
          %p579 = pneg %p152
        $region50: #{tpu_custom_call.1} parent=35 // pred_check_branch
          %581 = sbr.rel (%p579) target = $region52
        $region51: #{tpu_custom_call.1} parent=35 // pred_region
          %s582 = smul.u32 8, %s29
          %584 = vsyncadd %s575, 0
          %s585 = smul.addr %s28, 8
          %s586 = sadd.s32 %s582, %s585
          %s587 = smul.addr %s586, 8
          %s588 = scalar_lea.hbm %s4, %s587
          %s589 = sshll.u32 %s578, 4
          %s590 = int_to_ptr.vmem [resolvable:$true] %s589
          %s591 = sshll.u32 %s588, 4
          %s592 = int_to_ptr.hbm [resolvable:$true] %s591
          %597 = dma.vmem_to_hbm [thread:$0]  %s590, 1024, %s592, %s575, 128, 128, 8
        $region52: #{tpu_custom_call.1} parent=35 // pred_fallthru
          _
      $region36: #{tpu_custom_call.1} parent=5 // pred_fallthru
        _
      %p598 = scmp.le.s32.totalorder 2, %s19
      // Predicated region
      $region53: #{tpu_custom_call.1} parent=5 // pred_check
        %p599 = pneg %p598
      $region54: #{tpu_custom_call.1} parent=5 // pred_check_branch
        %601 = sbr.rel (%p599) target = $region56
      $region55: #{tpu_custom_call.1} parent=5 // pred_region
        %s602 = ssub.s32 %s19, 2
        // Predicated region
        $region57: #{tpu_custom_call.1} parent=55 // pred_check
          %p603 = pneg %p158
        $region58: #{tpu_custom_call.1} parent=55 // pred_check_branch
          %605 = sbr.rel (%p603) target = $region60
        $region59: #{tpu_custom_call.1} parent=55 // pred_region
          %s606 = sand.u32 %s143, 1
          %s607 = scalar_lea.sflag [#allocation4], %s606
          %s608 = sand.u32 %s143, 1
          %s609 = smul.addr %s608, 64
          %s610 = scalar_lea.vmem [#allocation8], %s609
          %612 = dma.done %s607, 1024
        $region60: #{tpu_custom_call.1} parent=55 // pred_fallthru
          _
      $region56: #{tpu_custom_call.1} parent=5 // pred_fallthru
        _
    $region6: #{tpu_custom_call.1} parent=1 // loop_footer
      %s23 = sadd.s32 1, %s19
    $region7: #{tpu_custom_call.1} parent=1 // loop_footer_branch
      %18 = sbr.rel target = $region3
    $region8: #{tpu_custom_call.1} parent=1 // loop_exit
      _
    %613 = vsyncpa [#allocation3], 1
    %s614 = scalar_lea.sflag [#allocation3], 1
    %615 = vsyncpa %s614, 1
    %616 = vsyncpa [#allocation6], 1
    %s617 = scalar_lea.sflag [#allocation6], 1
    %618 = vsyncpa %s617, 1
    %619 = vsyncpa [#allocation4], 1
    %s620 = scalar_lea.sflag [#allocation4], 1
    %621 = vsyncpa %s620, 1

// kernel: tpu_custom_call.1
$region0: #{tpu_custom_call.1}
  #allocation0 [shape = 'u32[]', space=smem, size = 0x4, offset = 0x4, fixed_abs, tag = 'smem constant byte address 0x4 - core index']
  #allocation1 [shape = 'u32[72,128]{1,0:T(1,128)}', space=vmem, size = 0x9000, scoped, tag = 'internal scratch']
  %s0 = inlined_call_operand.hbm [shape: f32[2,64,128], index: 0, kind: input, shape index: {}]
  %s1 = inlined_call_operand.hbm [shape: f32[2,2,128], index: 1, kind: input, shape index: {}]
  %s2 = inlined_call_operand.hbm [shape: f32[128,128], index: 2, kind: input, shape index: {}]
  %s3 = inlined_call_operand.vmem [shape: f32[1,128], index: 3, kind: input, shape index: {}]
  %s4 = inlined_call_operand.hbm [shape: f32[2,64,128], index: 4, kind: output, shape index: {}]
  %s5 = sld [smem:[#allocation0]]
  $region61: #{tpu_custom_call.1} parent=0
    _
  %s7 = ssub.s32 1, %s5
  %s8 = scalar_select 0, %s7, %s5
  $region1: #{tpu_custom_call.1} parent=0
    #allocation2 [shape = 'u8[65536]{0}', space=vmem, size = 0x10000, scoped, tag = 'input window, operand 0']
    #allocation3 [shape = 's32[2]{0}', space=sflag, size = 0x8, scoped, tag = 'scoped memory for tpu_custom_call.1']
    #allocation4 [shape = 's32[2]{0}', space=sflag, size = 0x8, scoped, tag = 'scoped memory for tpu_custom_call.1']
    #allocation5 [shape = 'u8[2048]{0}', space=vmem, size = 0x800, scoped, tag = 'input window, operand 1']
    #allocation6 [shape = 's32[2]{0}', space=sflag, size = 0x8, scoped, tag = 'scoped memory for tpu_custom_call.1']
    #allocation7 [shape = 'u8[65536]{0}', space=vmem, size = 0x10000, scoped, tag = 'input window, operand 2, single buffered']
    #allocation8 [shape = 'u8[65536]{0}', space=vmem, size = 0x10000, scoped, tag = 'output window, operand 0']
    %9 = vsyncpa [#allocation3], 0
    %s10 = scalar_lea.sflag [#allocation3], 1
    %11 = vsyncpa %s10, 0
    %12 = vsyncpa [#allocation6], 0
    %s13 = scalar_lea.sflag [#allocation6], 1
    %14 = vsyncpa %s13, 0
    %15 = vsyncpa [#allocation4], 0
    %s16 = scalar_lea.sflag [#allocation4], 1
    %17 = vsyncpa %s16, 0
    loop: start=0, step=1, limit=4
    $region2: #{tpu_custom_call.1} parent=1 // loop_pre_header
      _
    $region3: #{tpu_custom_call.1} parent=1 // loop_header
      %s19 = sphi 0, %s23
      %p20 = scmp.ge.s32.totalorder %s19, 4
      %s26 = sphi 0, %s38
      %s27 = sphi 0, %s34
      %s28 = sphi 0, %s26
      %s29 = sphi 0, %s27
      %s30 = sphi 0, %s28
      %s31 = sphi 0, %s29
      %s43 = sphi 0, %s45
      %s46 = sphi 0, %s43
      %s47 = sphi 0, %s46
      %s63 = sphi 0, %s47
      %s69 = sphi 0, %s71
      %s72 = sphi 0, %s69
      %s73 = sphi 0, %s72
      %s89 = sphi 0, %s73
      %s93 = sphi 0, %s93
      %s95 = sphi 0, %s93
      %s96 = sphi 0, %s95
      %s110 = sphi 0, %s96
      %s114 = sphi 0, %s114
      %s116 = sphi 0, %s114
      %s117 = sphi 0, %s116
      %s131 = sphi 0, %s117
      %s139 = sphi 0, %s141
      %s142 = sphi 0, %s139
      %s143 = sphi 0, %s142
      %s159 = sphi 0, %s143
    $region4: #{tpu_custom_call.1} parent=1 // loop_header_branch
      %22 = sbr.rel (%p20) target = $region8
    $region5: #{tpu_custom_call.1} parent=1 // loop_body
      %s24 = ssub.s32 %s19, 1
      %s25 = ssub.s32 %s19, 2
      %s32 = sadd.s32 1, %s27
      %p33 = scmp.ge.s32.totalorder %s32, 1
      %s34 = scalar_select %p33, 0, %s32
      %s35 = sadd.s32 1, %s26
      %s36 = scalar_select %p33, %s35, %s26
      %p37 = scmp.ge.s32.totalorder %s36, 2
      %s38 = scalar_select %p37, 0, %s36
      %s39 = ssub.s32 %s26, %s38
      %s40 = ssub.s32 %s27, %s34
      %s41 = sor.u32 %s39, %s40
      %p42 = scmp.eq.s32.totalorder %s41, 0
      %s44 = sadd.s32 %s43, 1
      %s45 = scalar_select %p42, %s43, %s44
      %p48 = pneg %p42
      %p49 = scmp.eq.s32.totalorder %s19, 1
      %p50 = por %p48, %p49
      %p51 = scmp.ne.s32.totalorder %s43, %s46
      %p52 = scmp.eq.s32.totalorder %s19, 0
      %p53 = por %p51, %p52
      %p54 = scmp.ne.s32.totalorder %s43, %s46
      %p55 = scmp.eq.s32.totalorder %s24, 1
      %p56 = por %p54, %p55
      %p57 = scmp.ne.s32.totalorder %s46, %s47
      %p58 = scmp.eq.s32.totalorder %s24, 0
      %p59 = por %p57, %p58
      %p60 = scmp.ne.s32.totalorder %s46, %s47
      %p61 = scmp.eq.s32.totalorder %s25, 1
      %p62 = por %p60, %p61
      %p64 = scmp.ne.s32.totalorder %s47, %s63
      %p65 = scmp.eq.s32.totalorder %s25, 0
      %p66 = por %p64, %p65
      %s67 = ssub.s32 %s26, %s38
      %p68 = scmp.eq.s32.totalorder %s67, 0
      %s70 = sadd.s32 %s69, 1
      %s71 = scalar_select %p68, %s69, %s70
      %p74 = pneg %p68
      %p75 = scmp.eq.s32.totalorder %s19, 1
      %p76 = por %p74, %p75
      %p77 = scmp.ne.s32.totalorder %s69, %s72
      %p78 = scmp.eq.s32.totalorder %s19, 0
      %p79 = por %p77, %p78
      %p80 = scmp.ne.s32.totalorder %s69, %s72
      %p81 = scmp.eq.s32.totalorder %s24, 1
      %p82 = por %p80, %p81
      %p83 = scmp.ne.s32.totalorder %s72, %s73
      %p84 = scmp.eq.s32.totalorder %s24, 0
      %p85 = por %p83, %p84
      %p86 = scmp.ne.s32.totalorder %s72, %s73
      %p87 = scmp.eq.s32.totalorder %s25, 1
      %p88 = por %p86, %p87
      %p90 = scmp.ne.s32.totalorder %s73, %s89
      %p91 = scmp.eq.s32.totalorder %s25, 0
      %p92 = por %p90, %p91
      %s94 = sadd.s32 %s93, 1
      %p97 = scmp.eq.s32.totalorder %s19, 1
      %p98 = scmp.ne.s32.totalorder %s93, %s95
      %p99 = scmp.eq.s32.totalorder %s19, 0
      %p100 = por %p98, %p99
      %p101 = scmp.ne.s32.totalorder %s93, %s95
      %p102 = scmp.eq.s32.totalorder %s24, 1
      %p103 = por %p101, %p102
      %p104 = scmp.ne.s32.totalorder %s95, %s96
      %p105 = scmp.eq.s32.totalorder %s24, 0
      %p106 = por %p104, %p105
      %p107 = scmp.ne.s32.totalorder %s95, %s96
      %p108 = scmp.eq.s32.totalorder %s25, 1
      %p109 = por %p107, %p108
      %p111 = scmp.ne.s32.totalorder %s96, %s110
      %p112 = scmp.eq.s32.totalorder %s25, 0
      %p113 = por %p111, %p112
      %s115 = sadd.s32 %s114, 1
      %p118 = scmp.eq.s32.totalorder %s19, 1
      %p119 = scmp.ne.s32.totalorder %s114, %s116
      %p120 = scmp.eq.s32.totalorder %s19, 0
      %p121 = por %p119, %p120
      %p122 = scmp.ne.s32.totalorder %s114, %s116
      %p123 = scmp.eq.s32.totalorder %s24, 1
      %p124 = por %p122, %p123
      %p125 = scmp.ne.s32.totalorder %s116, %s117
      %p126 = scmp.eq.s32.totalorder %s24, 0
      %p127 = por %p125, %p126
      %p128 = scmp.ne.s32.totalorder %s116, %s117
      %p129 = scmp.eq.s32.totalorder %s25, 1
      %p130 = por %p128, %p129
      %p132 = scmp.ne.s32.totalorder %s117, %s131
      %p133 = scmp.eq.s32.totalorder %s25, 0
      %p134 = por %p132, %p133
      %s135 = ssub.s32 %s26, %s38
      %s136 = ssub.s32 %s27, %s34
      %s137 = sor.u32 %s135, %s136
      %p138 = scmp.eq.s32.totalorder %s137, 0
      %s140 = sadd.s32 %s139, 1
      %s141 = scalar_select %p138, %s139, %s140
      %p144 = pneg %p138
      %p145 = scmp.eq.s32.totalorder %s19, 1
      %p146 = por %p144, %p145
      %p147 = scmp.ne.s32.totalorder %s139, %s142
      %p148 = scmp.eq.s32.totalorder %s19, 0
      %p149 = por %p147, %p148
      %p150 = scmp.ne.s32.totalorder %s139, %s142
      %p151 = scmp.eq.s32.totalorder %s24, 1
      %p152 = por %p150, %p151
      %p153 = scmp.ne.s32.totalorder %s142, %s143
      %p154 = scmp.eq.s32.totalorder %s24, 0
      %p155 = por %p153, %p154
      %p156 = scmp.ne.s32.totalorder %s142, %s143
      %p157 = scmp.eq.s32.totalorder %s25, 1
      %p158 = por %p156, %p157
      %p160 = scmp.ne.s32.totalorder %s143, %s159
      %p161 = scmp.eq.s32.totalorder %s25, 0
      %p162 = por %p160, %p161
      %p163 = scmp.le.s32.totalorder 1, %s19
      %p164 = scmp.lt.s32.totalorder %s19, 3
      %p165 = pnand %p163, %p164
      %p166 = pneg %p165
      // Predicated region
      $region9: #{tpu_custom_call.1} parent=5 // pred_check
        _
      $region10: #{tpu_custom_call.1} parent=5 // pred_check_branch
        %168 = sbr.rel (%p165) target = $region12
      $region11: #{tpu_custom_call.1} parent=5 // pred_region
        %s169 = ssub.s32 %s19, 1
        // Predicated region
        $region13: #{tpu_custom_call.1} parent=11 // pred_check
          %p170 = pneg %p106
        $region14: #{tpu_custom_call.1} parent=11 // pred_check_branch
          %172 = sbr.rel (%p170) target = $region16
        $region15: #{tpu_custom_call.1} parent=11 // pred_region
          %174 = vsyncadd [#allocation6], 0
          %s175 = sshll.u32 %s2, 4
          %s176 = int_to_ptr.hbm [resolvable:$true] %s175
          %s177 = sshll.u32 [#allocation7], 4
          %s178 = int_to_ptr.vmem [resolvable:$true] %s177
          %183 = dma.hbm_to_vmem [thread:$0]  %s176, 2048, %s178, [#allocation6], 128, 128, 8
        $region16: #{tpu_custom_call.1} parent=11 // pred_fallthru
          _
        // Predicated region
        $region17: #{tpu_custom_call.1} parent=11 // pred_check
          %p184 = pneg %p127
        $region18: #{tpu_custom_call.1} parent=11 // pred_check_branch
          %186 = sbr.rel (%p184) target = $region20
        $region19: #{tpu_custom_call.1} parent=11 // pred_region
          _
        $region20: #{tpu_custom_call.1} parent=11 // pred_fallthru
          _
      $region12: #{tpu_custom_call.1} parent=5 // pred_fallthru
        _
      %p187 = scmp.lt.s32.totalorder %s19, 2
      // Predicated region
      $region21: #{tpu_custom_call.1} parent=5 // pred_check
        %p188 = pneg %p187
      $region22: #{tpu_custom_call.1} parent=5 // pred_check_branch
        %190 = sbr.rel (%p188) target = $region24
      $region23: #{tpu_custom_call.1} parent=5 // pred_region
        // Predicated region
        $region25: #{tpu_custom_call.1} parent=23 // pred_check
          %p191 = pneg %p53
        $region26: #{tpu_custom_call.1} parent=23 // pred_check_branch
          %193 = sbr.rel (%p191) target = $region28
        $region27: #{tpu_custom_call.1} parent=23 // pred_region
          %s194 = sand.u32 %s43, 1
          %s195 = scalar_lea.sflag [#allocation3], %s194
          %s196 = sand.u32 %s43, 1
          %s197 = smul.addr %s196, 64
          %s198 = scalar_lea.vmem [#allocation2], %s197
          %s199 = smul.u32 8, %s27
          %201 = vsyncadd %s195, 0
          %s202 = smul.addr %s26, 8
          %s203 = sadd.s32 %s199, %s202
          %s204 = smul.addr %s203, 8
          %s205 = scalar_lea.hbm %s0, %s204
          %s206 = sshll.u32 %s205, 4
          %s207 = int_to_ptr.hbm [resolvable:$true] %s206
          %s208 = sshll.u32 %s198, 4
          %s209 = int_to_ptr.vmem [resolvable:$true] %s208
          %214 = dma.hbm_to_vmem [thread:$0]  %s207, 1024, %s209, %s195, 128, 128, 8
        $region28: #{tpu_custom_call.1} parent=23 // pred_fallthru
          _
        // Predicated region
        $region29: #{tpu_custom_call.1} parent=23 // pred_check
          %p215 = pneg %p79
        $region30: #{tpu_custom_call.1} parent=23 // pred_check_branch
          %217 = sbr.rel (%p215) target = $region32
        $region31: #{tpu_custom_call.1} parent=23 // pred_region
          %s218 = sand.u32 %s19, 1
          %s219 = scalar_lea.sflag [#allocation6], %s218
          %s220 = sand.u32 %s69, 1
          %s221 = smul.addr %s220, 2
          %s222 = scalar_lea.vmem [#allocation5], %s221
          %224 = vsyncadd %s219, 0
          %s225 = smul.addr %s26, 2
          %s226 = scalar_lea.hbm %s1, %s225
          %s228 = sshll.u32 %s226, 4
          %s229 = int_to_ptr.hbm [resolvable:$true] %s228
          %s230 = sshll.u32 %s222, 4
          %s231 = int_to_ptr.vmem [resolvable:$true] %s230
          %233 = dma.hbm_to_vmem [thread:$0]  %s229, 32, %s231, %s219
        $region32: #{tpu_custom_call.1} parent=23 // pred_fallthru
          _
      $region24: #{tpu_custom_call.1} parent=5 // pred_fallthru
        _
      %p234 = scmp.le.s32.totalorder 1, %s19
      %p235 = scmp.lt.s32.totalorder %s19, 3
      %p236 = pnand %p234, %p235
      %p237 = pneg %p236
      // Predicated region
      $region33: #{tpu_custom_call.1} parent=5 // pred_check
        _
      $region34: #{tpu_custom_call.1} parent=5 // pred_check_branch
        %239 = sbr.rel (%p236) target = $region36
      $region35: #{tpu_custom_call.1} parent=5 // pred_region
        %s240 = ssub.s32 %s19, 1
        %s241 = sand.u32 %s46, 1
        %s242 = scalar_lea.sflag [#allocation3], %s241
        %s243 = sand.u32 %s46, 1
        %s244 = smul.addr %s243, 64
        %s245 = scalar_lea.vmem [#allocation2], %s244
        // Predicated region
        $region37: #{tpu_custom_call.1} parent=35 // pred_check
          %p246 = pneg %p59
        $region38: #{tpu_custom_call.1} parent=35 // pred_check_branch
          %248 = sbr.rel (%p246) target = $region40
        $region39: #{tpu_custom_call.1} parent=35 // pred_region
          %250 = dma.done %s242, 1024
        $region40: #{tpu_custom_call.1} parent=35 // pred_fallthru
          _
        %s251 = sand.u32 %s24, 1
        %s252 = scalar_lea.sflag [#allocation6], %s251
        %s253 = sand.u32 %s72, 1
        %s254 = smul.addr %s253, 2
        %s255 = scalar_lea.vmem [#allocation5], %s254
        // Predicated region
        $region41: #{tpu_custom_call.1} parent=35 // pred_check
          %p256 = pneg %p85
        $region42: #{tpu_custom_call.1} parent=35 // pred_check_branch
          %258 = sbr.rel (%p256) target = $region44
        $region43: #{tpu_custom_call.1} parent=35 // pred_region
          %260 = dma.done %s252, 32
        $region44: #{tpu_custom_call.1} parent=35 // pred_fallthru
          _
        // Predicated region
        $region45: #{tpu_custom_call.1} parent=35 // pred_check
          %p261 = pneg %p106
        $region46: #{tpu_custom_call.1} parent=35 // pred_check_branch
          %263 = sbr.rel (%p261) target = $region48
        $region47: #{tpu_custom_call.1} parent=35 // pred_region
          %265 = dma.done [#allocation6], 2048
        $region48: #{tpu_custom_call.1} parent=35 // pred_fallthru
          _
        %s266 = sand.u32 %s46, 1
        %s267 = scalar_lea.sflag [#allocation3], %s266
        %s268 = sand.u32 %s46, 1
        %s269 = smul.addr %s268, 64
        %s270 = scalar_lea.vmem [#allocation2], %s269
        %p271 = pneg %p59
        %p272 = pneg %p56
        %s273 = sand.u32 %s24, 1
        %s274 = scalar_lea.sflag [#allocation6], %s273
        %s275 = sand.u32 %s72, 1
        %s276 = smul.addr %s275, 2
        %s277 = scalar_lea.vmem [#allocation5], %s276
        %p278 = pneg %p85
        %p279 = pneg %p82
        %p280 = pneg %p106
        %p281 = pneg %p103
        %p282 = pneg %p127
        %p283 = pneg %p124
        %p284 = pneg %p155
        %p285 = pneg %p152
        %s286 = sand.u32 %s142, 1
        %s287 = scalar_lea.sflag [#allocation4], %s286
        %s288 = sand.u32 %s142, 1
        %s289 = smul.addr %s288, 64
        %s290 = scalar_lea.vmem [#allocation8], %s289
        %s291 = smul.u32 8, %s29
        %s292 = smul.u32 8, %s29
        %v293 = vld [vmem:[%s245] sm:$0xff]
        %v294 = vld [vmem:[%s245 + $0x8] sm:$0xff]
        %v295 = vld [vmem:[%s245 + $0x10] sm:$0xff]
        %v296 = vld [vmem:[%s245 + $0x18] sm:$0xff]
        %v297 = vld [vmem:[%s245 + $0x20] sm:$0xff]
        %v298 = vld [vmem:[%s245 + $0x28] sm:$0xff]
        %v299 = vld [vmem:[%s245 + $0x30] sm:$0xff]
        %v300 = vld [vmem:[%s245 + $0x38] sm:$0xff]
        %v301 = vld [vmem:[%s255] sm:$0x1]
        %v302 = vld [vmem:[%s255 + $0x1] sm:$0x1]
        %303 = vadd.xlane.f32.xlu0 %v293
        %v304 = vpop.xlane.xlu0 %303
        %305 = vadd.xlane.f32.xlu0 %v294
        %v306 = vpop.xlane.xlu0 %305
        %307 = vadd.xlane.f32.xlu0 %v295
        %v308 = vpop.xlane.xlu0 %307
        %309 = vadd.xlane.f32.xlu0 %v296
        %v310 = vpop.xlane.xlu0 %309
        %311 = vadd.xlane.f32.xlu0 %v297
        %v312 = vpop.xlane.xlu0 %311
        %313 = vadd.xlane.f32.xlu0 %v298
        %v314 = vpop.xlane.xlu0 %313
        %315 = vadd.xlane.f32.xlu0 %v299
        %v316 = vpop.xlane.xlu0 %315
        %317 = vadd.xlane.f32.xlu0 %v300
        %v318 = vpop.xlane.xlu0 %317
        %v319 = vmul.f32 %v304, 0.03125
        %v320 = vmul.f32 %v306, 0.03125
        %v321 = vmul.f32 %v308, 0.03125
        %v322 = vmul.f32 %v310, 0.03125
        %v323 = vmul.f32 %v312, 0.03125
        %v324 = vmul.f32 %v314, 0.03125
        %v325 = vmul.f32 %v316, 0.03125
        %v326 = vmul.f32 %v318, 0.03125
        %v327 = vmul.f32 %v293, %v293
        %v328 = vmul.f32 %v294, %v294
        %v329 = vmul.f32 %v295, %v295
        %v330 = vmul.f32 %v296, %v296
        %v331 = vmul.f32 %v297, %v297
        %v332 = vmul.f32 %v298, %v298
        %v333 = vmul.f32 %v299, %v299
        %v334 = vmul.f32 %v300, %v300
        %335 = vadd.xlane.f32.xlu0 %v327
        %v336 = vpop.xlane.xlu0 %335
        %337 = vadd.xlane.f32.xlu0 %v328
        %v338 = vpop.xlane.xlu0 %337
        %339 = vadd.xlane.f32.xlu0 %v329
        %v340 = vpop.xlane.xlu0 %339
        %341 = vadd.xlane.f32.xlu0 %v330
        %v342 = vpop.xlane.xlu0 %341
        %343 = vadd.xlane.f32.xlu0 %v331
        %v344 = vpop.xlane.xlu0 %343
        %345 = vadd.xlane.f32.xlu0 %v332
        %v346 = vpop.xlane.xlu0 %345
        %347 = vadd.xlane.f32.xlu0 %v333
        %v348 = vpop.xlane.xlu0 %347
        %349 = vadd.xlane.f32.xlu0 %v334
        %v350 = vpop.xlane.xlu0 %349
        %v351 = vmul.f32 %v336, 0.03125
        %v352 = vmul.f32 %v338, 0.03125
        %v353 = vmul.f32 %v340, 0.03125
        %v354 = vmul.f32 %v342, 0.03125
        %v355 = vmul.f32 %v344, 0.03125
        %v356 = vmul.f32 %v346, 0.03125
        %v357 = vmul.f32 %v348, 0.03125
        %v358 = vmul.f32 %v350, 0.03125
        %v359 = vmul.f32 %v319, %v319
        %v360 = vmul.f32 %v320, %v320
        %v361 = vmul.f32 %v321, %v321
        %v362 = vmul.f32 %v322, %v322
        %v363 = vmul.f32 %v323, %v323
        %v364 = vmul.f32 %v324, %v324
        %v365 = vmul.f32 %v325, %v325
        %v366 = vmul.f32 %v326, %v326
        %v367 = vsub.f32 %v351, %v359
        %v368 = vsub.f32 %v352, %v360
        %v369 = vsub.f32 %v353, %v361
        %v370 = vsub.f32 %v354, %v362
        %v371 = vsub.f32 %v355, %v363
        %v372 = vsub.f32 %v356, %v364
        %v373 = vsub.f32 %v357, %v365
        %v374 = vsub.f32 %v358, %v366
        %v375 = vsub.f32 %v293, %v319
        %v376 = vsub.f32 %v294, %v320
        %v377 = vsub.f32 %v295, %v321
        %v378 = vsub.f32 %v296, %v322
        %v379 = vsub.f32 %v297, %v323
        %v380 = vsub.f32 %v298, %v324
        %v381 = vsub.f32 %v299, %v325
        %v382 = vsub.f32 %v300, %v326
        %v383 = vmax.f32 %v367, 0.0
        %v384 = vmax.f32 %v368, 0.0
        %v385 = vmax.f32 %v369, 0.0
        %v386 = vmax.f32 %v370, 0.0
        %v387 = vmax.f32 %v371, 0.0
        %v388 = vmax.f32 %v372, 0.0
        %v389 = vmax.f32 %v373, 0.0
        %v390 = vmax.f32 %v374, 0.0
        %v391 = vadd.f32 %v383, 1e-06
        %v392 = vadd.f32 %v384, 1e-06
        %v393 = vadd.f32 %v385, 1e-06
        %v394 = vadd.f32 %v386, 1e-06
        %v395 = vadd.f32 %v387, 1e-06
        %v396 = vadd.f32 %v388, 1e-06
        %v397 = vadd.f32 %v389, 1e-06
        %v398 = vadd.f32 %v390, 1e-06
        %v399 = vrsqrt.pop %v391
        %v400 = vmul.f32 %v399, %v391
        %v401 = vmul.f32 %v400, %v399
        %v402 = vmul.f32 0.5, %v401
        %v403 = vsub.f32 1.5, %v402
        %v404 = vmul.f32 %v399, %v403
        %vm405 = vweird.f32 %v391
        %vm406 = vweird.f32 %v399
        %vm407 = vmor %vm405, %vm406
        %v408 = vsel %vm407, %v399, %v404
        %v409 = vrsqrt.pop %v392
        %v410 = vmul.f32 %v409, %v392
        %v411 = vmul.f32 %v410, %v409
        %v412 = vmul.f32 0.5, %v411
        %v413 = vsub.f32 1.5, %v412
        %v414 = vmul.f32 %v409, %v413
        %vm415 = vweird.f32 %v392
        %vm416 = vweird.f32 %v409
        %vm417 = vmor %vm415, %vm416
        %v418 = vsel %vm417, %v409, %v414
        %v419 = vrsqrt.pop %v393
        %v420 = vmul.f32 %v419, %v393
        %v421 = vmul.f32 %v420, %v419
        %v422 = vmul.f32 0.5, %v421
        %v423 = vsub.f32 1.5, %v422
        %v424 = vmul.f32 %v419, %v423
        %vm425 = vweird.f32 %v393
        %vm426 = vweird.f32 %v419
        %vm427 = vmor %vm425, %vm426
        %v428 = vsel %vm427, %v419, %v424
        %v429 = vrsqrt.pop %v394
        %v430 = vmul.f32 %v429, %v394
        %v431 = vmul.f32 %v430, %v429
        %v432 = vmul.f32 0.5, %v431
        %v433 = vsub.f32 1.5, %v432
        %v434 = vmul.f32 %v429, %v433
        %vm435 = vweird.f32 %v394
        %vm436 = vweird.f32 %v429
        %vm437 = vmor %vm435, %vm436
        %v438 = vsel %vm437, %v429, %v434
        %v439 = vrsqrt.pop %v395
        %v440 = vmul.f32 %v439, %v395
        %v441 = vmul.f32 %v440, %v439
        %v442 = vmul.f32 0.5, %v441
        %v443 = vsub.f32 1.5, %v442
        %v444 = vmul.f32 %v439, %v443
        %vm445 = vweird.f32 %v395
        %vm446 = vweird.f32 %v439
        %vm447 = vmor %vm445, %vm446
        %v448 = vsel %vm447, %v439, %v444
        %v449 = vrsqrt.pop %v396
        %v450 = vmul.f32 %v449, %v396
        %v451 = vmul.f32 %v450, %v449
        %v452 = vmul.f32 0.5, %v451
        %v453 = vsub.f32 1.5, %v452
        %v454 = vmul.f32 %v449, %v453
        %vm455 = vweird.f32 %v396
        %vm456 = vweird.f32 %v449
        %vm457 = vmor %vm455, %vm456
        %v458 = vsel %vm457, %v449, %v454
        %v459 = vrsqrt.pop %v397
        %v460 = vmul.f32 %v459, %v397
        %v461 = vmul.f32 %v460, %v459
        %v462 = vmul.f32 0.5, %v461
        %v463 = vsub.f32 1.5, %v462
        %v464 = vmul.f32 %v459, %v463
        %vm465 = vweird.f32 %v397
        %vm466 = vweird.f32 %v459
        %vm467 = vmor %vm465, %vm466
        %v468 = vsel %vm467, %v459, %v464
        %v469 = vrsqrt.pop %v398
        %v470 = vmul.f32 %v469, %v398
        %v471 = vmul.f32 %v470, %v469
        %v472 = vmul.f32 0.5, %v471
        %v473 = vsub.f32 1.5, %v472
        %v474 = vmul.f32 %v469, %v473
        %vm475 = vweird.f32 %v398
        %vm476 = vweird.f32 %v469
        %vm477 = vmor %vm475, %vm476
        %v478 = vsel %vm477, %v469, %v474
        %v479 = vmul.f32 %v375, %v408
        %v480 = vmul.f32 %v376, %v418
        %v481 = vmul.f32 %v377, %v428
        %v482 = vmul.f32 %v378, %v438
        %v483 = vmul.f32 %v379, %v448
        %v484 = vmul.f32 %v380, %v458
        %v485 = vmul.f32 %v381, %v468
        %v486 = vmul.f32 %v382, %v478
        %v487 = vperm.slane %v302, 0
        %v488 = vmul.f32 %v479, %v487
        %v489 = vmul.f32 %v480, %v487
        %v490 = vmul.f32 %v481, %v487
        %v491 = vmul.f32 %v482, %v487
        %v492 = vmul.f32 %v483, %v487
        %v493 = vmul.f32 %v484, %v487
        %v494 = vmul.f32 %v485, %v487
        %v495 = vmul.f32 %v486, %v487
        %v496 = vperm.slane %v301, 0
        %v497 = vadd.f32 %v488, %v496
        %v498 = vadd.f32 %v489, %v496
        %v499 = vadd.f32 %v490, %v496
        %v500 = vadd.f32 %v491, %v496
        %v501 = vadd.f32 %v492, %v496
        %v502 = vadd.f32 %v493, %v496
        %v503 = vadd.f32 %v494, %v496
        %v504 = vadd.f32 %v495, %v496
        %v505 = vld [vmem:[#allocation7] sm:$0xff]
        %v506 = vld [vmem:[#allocation7 + $0x8] sm:$0xff]
        %v507 = vld [vmem:[#allocation7 + $0x10] sm:$0xff]
        %v508 = vld [vmem:[#allocation7 + $0x18] sm:$0xff]
        %v509 = vld [vmem:[#allocation7 + $0x20] sm:$0xff]
        %v510 = vld [vmem:[#allocation7 + $0x28] sm:$0xff]
        %v511 = vld [vmem:[#allocation7 + $0x30] sm:$0xff]
        %v512 = vld [vmem:[#allocation7 + $0x38] sm:$0xff]
        %v513 = vld [vmem:[#allocation7 + $0x40] sm:$0xff]
        %v514 = vld [vmem:[#allocation7 + $0x48] sm:$0xff]
        %v515 = vld [vmem:[#allocation7 + $0x50] sm:$0xff]
        %v516 = vld [vmem:[#allocation7 + $0x58] sm:$0xff]
        %v517 = vld [vmem:[#allocation7 + $0x60] sm:$0xff]
        %v518 = vld [vmem:[#allocation7 + $0x68] sm:$0xff]
        %v519 = vld [vmem:[#allocation7 + $0x70] sm:$0xff]
        %v520 = vld [vmem:[#allocation7 + $0x78] sm:$0xff]
        %v521 = vld [vmem:[%s3] sm:$0x1]
        %v523 = vperm.slane %v521, 0
        %525 = vmatpush.msra.mxu0 %v520
        %526 = vmatpush.msra.mxu0 %v519
        %527 = vmatpush.msra.mxu0 %v518
        %528 = vmatpush.msra.mxu0 %v517
        %529 = vmatpush.msra.mxu0 %v516
        %530 = vmatpush.msra.mxu0 %v515
        %531 = vmatpush.msra.mxu0 %v514
        %532 = vmatpush.msra.mxu0 %v513
        %533 = vmatpush.msra.mxu0 %v512
        %534 = vmatpush.msra.mxu0 %v511
        %535 = vmatpush.msra.mxu0 %v510
        %536 = vmatpush.msra.mxu0 %v509
        %537 = vmatpush.msra.mxu0 %v508
        %538 = vmatpush.msra.mxu0 %v507
        %539 = vmatpush.msra.mxu0 %v506
        %540 = vmatpush.msra.mxu0 %v505
        %541 = vmatmul.f32.gmra.mxu0 %v497
        %v542 = vpop.f32.mrf.mxu0
        %v543 = vadd.f32 %v523, %v542
        %544 = vmatmul.f32.gmra.mxu0 %v498
        %v545 = vpop.f32.mrf.mxu0
        %v546 = vadd.f32 %v523, %v545
        %547 = vmatmul.f32.gmra.mxu0 %v499
        %v548 = vpop.f32.mrf.mxu0
        %v549 = vadd.f32 %v523, %v548
        %550 = vmatmul.f32.gmra.mxu0 %v500
        %v551 = vpop.f32.mrf.mxu0
        %v552 = vadd.f32 %v523, %v551
        %553 = vmatmul.f32.gmra.mxu0 %v501
        %v554 = vpop.f32.mrf.mxu0
        %v555 = vadd.f32 %v523, %v554
        %556 = vmatmul.f32.gmra.mxu0 %v502
        %v557 = vpop.f32.mrf.mxu0
        %v558 = vadd.f32 %v523, %v557
        %559 = vmatmul.f32.gmra.mxu0 %v503
        %v560 = vpop.f32.mrf.mxu0
        %v561 = vadd.f32 %v523, %v560
        %562 = vmatmul.f32.gmra.mxu0 %v504
        %v563 = vpop.f32.mrf.mxu0
        %v564 = vadd.f32 %v523, %v563
        %565 = vdwg.mxu0
        %566 = vst [vmem:[%s290] sm:$0xff] %v543
        %567 = vst [vmem:[%s290 + $0x8] sm:$0xff] %v546
        %568 = vst [vmem:[%s290 + $0x10] sm:$0xff] %v549
        %569 = vst [vmem:[%s290 + $0x18] sm:$0xff] %v552
        %570 = vst [vmem:[%s290 + $0x20] sm:$0xff] %v555
        %571 = vst [vmem:[%s290 + $0x28] sm:$0xff] %v558
        %572 = vst [vmem:[%s290 + $0x30] sm:$0xff] %v561
        %573 = vst [vmem:[%s290 + $0x38] sm:$0xff] %v564
        %s574 = sand.u32 %s142, 1
        %s575 = scalar_lea.sflag [#allocation4], %s574
        %s576 = sand.u32 %s142, 1
        %s577 = smul.addr %s576, 64
        %s578 = scalar_lea.vmem [#allocation8], %s577
        // Predicated region
        $region49: #{tpu_custom_call.1} parent=35 // pred_check
          %p579 = pneg %p152
        $region50: #{tpu_custom_call.1} parent=35 // pred_check_branch
          %581 = sbr.rel (%p579) target = $region52
        $region51: #{tpu_custom_call.1} parent=35 // pred_region
          %s582 = smul.u32 8, %s29
          %584 = vsyncadd %s575, 0
          %s585 = smul.addr %s28, 8
          %s586 = sadd.s32 %s582, %s585
          %s587 = smul.addr %s586, 8
          %s588 = scalar_lea.hbm %s4, %s587
          %s589 = sshll.u32 %s578, 4
          %s590 = int_to_ptr.vmem [resolvable:$true] %s589
          %s591 = sshll.u32 %s588, 4
          %s592 = int_to_ptr.hbm [resolvable:$true] %s591
          %597 = dma.vmem_to_hbm [thread:$0]  %s590, 1024, %s592, %s575, 128, 128, 8
        $region52: #{tpu_custom_call.1} parent=35 // pred_fallthru
          _
      $region36: #{tpu_custom_call.1} parent=5 // pred_fallthru
        _
      %p598 = scmp.le.s32.totalorder 2, %s19
      // Predicated region
      $region53: #{tpu_custom_call.1} parent=5 // pred_check
        %p599 = pneg %p598
      $region54: #{tpu_custom_call.1} parent=5 // pred_check_branch
        %601 = sbr.rel (%p599) target = $region56
      $region55: #{tpu_custom_call.1} parent=5 // pred_region
        %s602 = ssub.s32 %s19, 2
        // Predicated region
        $region57: #{tpu_custom_call.1} parent=55 // pred_check
          %p603 = pneg %p158
        $region58: #{tpu_custom_call.1} parent=55 // pred_check_branch
          %605 = sbr.rel (%p603) target = $region60
        $region59: #{tpu_custom_call.1} parent=55 // pred_region
          %s606 = sand.u32 %s143, 1
          %s607 = scalar_lea.sflag [#allocation4], %s606
          %s608 = sand.u32 %s143, 1
          %s609 = smul.addr %s608, 64
          %s610 = scalar_lea.vmem [#allocation8], %s609
          %612 = dma.done %s607, 1024
        $region60: #{tpu_custom_call.1} parent=55 // pred_fallthru
          _
      $region56: #{tpu_custom_call.1} parent=5 // pred_fallthru
        _
    $region6: #{tpu_custom_call.1} parent=1 // loop_footer
      %s23 = sadd.s32 1, %s19
    $region7: #{tpu_custom_call.1} parent=1 // loop_footer_branch
      %18 = sbr.rel target = $region3
    $region8: #{tpu_custom_call.1} parent=1 // loop_exit
      _
    %613 = vsyncpa [#allocation3], 1
    %s614 = scalar_lea.sflag [#allocation3], 1
    %615 = vsyncpa %s614, 1
    %616 = vsyncpa [#allocation6], 1
    %s617 = scalar_lea.sflag [#allocation6], 1
    %618 = vsyncpa %s617, 1
    %619 = vsyncpa [#allocation4], 1
    %s620 = scalar_lea.sflag [#allocation4], 1
    %621 = vsyncpa %s620, 1

</llo_original>
